<compile_context>
chip_gen: v5e
topology: v5e:2x2
jax: 0.10.0
libtpu: 0.0.40
codegen_flags: <defaults>
</compile_context>

<pallas_src>
import functools

import jax
import jax.numpy as jnp
from jax.experimental import pallas as pl
from jax.experimental.pallas import tpu as pltpu


def _attention_fusion_kernel(xd_ref, xs_ref, w1d_ref, w1s_ref, b1_ref,
                             w2_ref, b2_ref, out_ref, *, split_store):
    """One (batch, spatial-tile) step: out = [x_d; x_s] * sigmoid(MLP([x_d; x_s]))."""
    x_d = xd_ref[0]                                    # (Cd, TN), I/O dtype -> MXU
    x_s = xs_ref[0]                                    # (Cs, TN)
    cd = x_d.shape[0]

    # conv1 (1x1) + folded BN1; the channel concat is fused as two matmuls.
    # Operands stay in the streamed dtype (bf16 native on v6e/v7x MXU), f32 accumulate.
    h = (jnp.dot(w1d_ref[...], x_d, preferred_element_type=jnp.float32)
         + jnp.dot(w1s_ref[...], x_s, preferred_element_type=jnp.float32))
    h = h + b1_ref[...]                                # (Ch, 1) broadcast over lanes
    h = jnp.maximum(h, 0.01 * h)                       # LeakyReLU(negative_slope=0.01)

    # conv2 (1x1) + folded BN2 -> sigmoid gate; exp + reciprocal go to the EUP slot.
    a = jnp.dot(w2_ref[...], h.astype(w2_ref.dtype),
                preferred_element_type=jnp.float32) + b2_ref[...]
    gate = pl.reciprocal(1.0 + jnp.exp(-a))            # (C, TN), f32

    # Gate each half in the output dtype (no f32 (C, TN) concat temp in VMEM).
    gate_d = gate[:cd].astype(out_ref.dtype)
    gate_s = gate[cd:].astype(out_ref.dtype)
    out_d = x_d.astype(out_ref.dtype) * gate_d
    out_s = x_s.astype(out_ref.dtype) * gate_s
    if split_store:
        # Cd is sublane-pack aligned for the output dtype: two lane-dense stores.
        out_ref[0, :cd] = out_d
        out_ref[0, cd:] = out_s
    else:
        # Unaligned split point: concat the already-gated halves in the output dtype.
        out_ref[0] = jnp.concatenate([out_d, out_s], axis=0)


def _round_up(x, m):
    return ((x + m - 1) // m) * m


def _vmem_capacity_bytes():
    try:
        return int(pltpu.get_tpu_info().vmem_capacity_bytes)
    except Exception:
        return 64 * 1024 * 1024        # conservative: v7x per-TensorCore VMEM


def _pick_token_tile(hw, n_batch, per_token_bytes, vmem_budget_bytes):
    """Spatial (lane) tile: multiple of 128, as large as the VMEM budget allows,
    with >=2 total grid steps so both v7x TensorCores get work."""
    hw_pad = _round_up(hw, 128)
    tn = max(128, (vmem_budget_bytes // max(per_token_bytes, 1)) // 128 * 128)
    tn = min(tn, hw_pad)
    # Guarantee at least 2 grid steps (v7x has 2 TCs fed by "parallel" axes).
    while n_batch * (-(-hw_pad // tn)) < 2 and tn > 128:
        tn = max(128, (tn // 2) // 128 * 128)
    # Prefer a tile that divides the 128-padded extent (limits extra padding).
    t = tn
    while t >= 128 and t >= tn // 2:
        if hw_pad % t == 0:
            tn = t
            break
        t -= 128
    hw_pad = _round_up(hw_pad, tn)
    return tn, hw_pad


def attention_fusion_pallas(x_d, x_s, w1d, w1s, b1, w2, b2):
    """x_d: (N, Cd, HW), x_s: (N, Cs, HW). Returns (N, Cd+Cs, HW) attended features."""
    N, Cd, HW = x_d.shape
    Ns, Cs, HWs = x_s.shape
    assert (N, HW) == (Ns, HWs)
    Ch = w1d.shape[0]
    C = Cd + Cs

    io_dtype = x_d.dtype
    itemsize = jnp.dtype(io_dtype).itemsize

    # Weights stream in the I/O dtype (bf16 feeds the MXU natively on v6e/v7x);
    # biases and accumulation stay f32.
    w1d = w1d.astype(io_dtype)
    w1s = w1s.astype(io_dtype)
    w2 = w2.astype(io_dtype)
    b1 = b1.astype(jnp.float32)
    b2 = b2.astype(jnp.float32)

    # Per-token VMEM bytes: double-buffered x_d/x_s/out tiles + f32 temporaries
    # (h, gate, gated halves ~ (Ch + 2*C) rows of f32 per token).
    per_token = 2 * (Cd + Cs + C) * itemsize + 4 * (Ch + 2 * C)
    weight_bytes = 2 * Ch * C * itemsize + 4 * (Ch + C)

    capacity = _vmem_capacity_bytes()
    budget = max(8 * 1024 * 1024, capacity // 4)   # ~32 MiB v5e/v6e, ~16 MiB v7x per TC
    TN, HW_pad = _pick_token_tile(HW, N, per_token, budget)

    if HW_pad != HW:
        pad = HW_pad - HW
        x_d = jnp.pad(x_d, ((0, 0), (0, 0), (0, pad)))
        x_s = jnp.pad(x_s, ((0, 0), (0, 0), (0, pad)))

    grid = (N, HW_pad // TN)

    # Need-derived VMEM limit: 2x working set, never more than half physical VMEM.
    need = per_token * TN + weight_bytes
    vmem_limit = int(min(max(2 * need, 8 * 1024 * 1024), capacity // 2, 64 * 1024 * 1024))

    # Split stores only when Cd is aligned to the output dtype's sublane pack.
    pack = {4: 8, 2: 16, 1: 32}.get(itemsize, 8)
    split_store = (Cd % pack == 0)

    kernel = pl.pallas_call(
        functools.partial(_attention_fusion_kernel, split_store=split_store),
        out_shape=jax.ShapeDtypeStruct((N, C, HW_pad), io_dtype),
        grid_spec=pltpu.PrefetchScalarGridSpec(
            num_scalar_prefetch=0,
            grid=grid,
            in_specs=[
                pl.BlockSpec((1, Cd, TN), lambda n, t: (n, 0, t)),   # depth tile
                pl.BlockSpec((1, Cs, TN), lambda n, t: (n, 0, t)),   # semantic tile
                pl.BlockSpec((Ch, Cd), lambda n, t: (0, 0)),         # W1 (depth cols)
                pl.BlockSpec((Ch, Cs), lambda n, t: (0, 0)),         # W1 (semantic cols)
                pl.BlockSpec((Ch, 1), lambda n, t: (0, 0)),          # b1 (folded BN1)
                pl.BlockSpec((C, Ch), lambda n, t: (0, 0)),          # W2 (folded BN2)
                pl.BlockSpec((C, 1), lambda n, t: (0, 0)),           # b2
            ],
            out_specs=pl.BlockSpec((1, C, TN), lambda n, t: (n, 0, t)),
        ),
        compiler_params=pltpu.CompilerParams(
            dimension_semantics=("parallel", "parallel"),
            vmem_limit_bytes=vmem_limit),
    )
    out = kernel(x_d, x_s, w1d, w1s, b1, w2, b2)
    if HW_pad != HW:
        out = out[:, :, :HW]
    return out


def fold_bn(conv_w, conv_b, gamma, beta, running_mean, running_var, eps=1e-5):
    """Fold eval-mode BatchNorm into a 1x1 conv.

    conv_w: (C_out, C_in) (1x1 kernel squeezed), conv_b: (C_out,).
    Returns (W, b) such that y = W @ X + b with X: (C_in, tokens), b: (C_out, 1).
    """
    scale = gamma / jnp.sqrt(running_var + eps)           # (C_out,)
    w_folded = conv_w * scale[:, None]                    # (C_out, C_in)
    b_folded = (conv_b - running_mean) * scale + beta     # (C_out,)
    return w_folded, b_folded[:, None]


def attention_fusion_forward(depth_feat, semantic_feat, params):
    """NCHW in, NCHW out — matches the PyTorch module's forward (eval-mode BN)."""
    N, Cd, H, W = depth_feat.shape
    _, Cs, _, _ = semantic_feat.shape
    C = Cd + Cs

    # NCHW -> (N, C, H*W): free reshapes, no transposes and no HBM concat.
    x_d = depth_feat.reshape(N, Cd, H * W)
    x_s = semantic_feat.reshape(N, Cs, H * W)

    w1, b1 = fold_bn(params["conv1_w"], params["conv1_b"],
                     params["bn1_gamma"], params["bn1_beta"],
                     params["bn1_mean"], params["bn1_var"])
    w2, b2 = fold_bn(params["conv2_w"], params["conv2_b"],
                     params["bn2_gamma"], params["bn2_beta"],
                     params["bn2_mean"], params["bn2_var"])
    w1d, w1s = w1[:, :Cd], w1[:, Cd:]                      # fuse the concat into W1

    out = attention_fusion_pallas(x_d, x_s, w1d, w1s, b1, w2, b2)
    return out.reshape(N, C, H, W)


def reference_forward(depth_feat, semantic_feat, params):
    """Pure-JAX reference matching the PyTorch semantics (eval-mode BN)."""
    combined = jnp.concatenate([depth_feat, semantic_feat], axis=1)
    N, C, H, W = combined.shape
    x = jnp.transpose(combined, (0, 2, 3, 1)).reshape(-1, C)

    eps = 1e-5
    h = x @ params["conv1_w"].T + params["conv1_b"]
    h = (h - params["bn1_mean"]) / jnp.sqrt(params["bn1_var"] + eps)
    h = h * params["bn1_gamma"] + params["bn1_beta"]
    h = jnp.where(h > 0, h, 0.01 * h)

    a = h @ params["conv2_w"].T + params["conv2_b"]
    a = (a - params["bn2_mean"]) / jnp.sqrt(params["bn2_var"] + eps)
    a = a * params["bn2_gamma"] + params["bn2_beta"]
    a = jax.nn.sigmoid(a)

    out = (x * a).reshape(N, H, W, C).transpose(0, 3, 1, 2)
    return out


def init_params(key, in_channels):
    """Deterministic synthetic parameters matching the PyTorch module shapes."""
    hidden = in_channels // 4
    ks = jax.random.split(key, 8)
    return {
        # nn.Conv2d(in_channels, in_channels//4, 1): weight (C//4, C, 1, 1) -> (C//4, C)
        "conv1_w": jax.random.normal(ks[0], (hidden, in_channels), jnp.float32) * 0.1,
        "conv1_b": jax.random.normal(ks[1], (hidden,), jnp.float32) * 0.1,
        "bn1_gamma": 1.0 + 0.1 * jax.random.normal(ks[2], (hidden,), jnp.float32),
        "bn1_beta": 0.1 * jax.random.normal(ks[3], (hidden,), jnp.float32),
        "bn1_mean": 0.05 * jax.random.normal(ks[4], (hidden,), jnp.float32),
        "bn1_var": jnp.abs(1.0 + 0.1 * jax.random.normal(ks[5], (hidden,), jnp.float32)),
        # nn.Conv2d(in_channels//4, in_channels, 1): weight (C, C//4, 1, 1) -> (C, C//4)
        "conv2_w": jax.random.normal(ks[6], (in_channels, hidden), jnp.float32) * 0.1,
        "conv2_b": jax.random.normal(ks[7], (in_channels,), jnp.float32) * 0.1,
        "bn2_gamma": jnp.ones((in_channels,), jnp.float32),
        "bn2_beta": jnp.zeros((in_channels,), jnp.float32),
        "bn2_mean": jnp.zeros((in_channels,), jnp.float32),
        "bn2_var": jnp.ones((in_channels,), jnp.float32),
    }


if __name__ == "__main__":
    key = jax.random.PRNGKey(0)
    k_depth, k_sem, k_params = jax.random.split(key, 3)

    # batch=2, each feature has 8 channels -> combined in_channels=16, spatial 16x16.
    N, C_each, H, W = 2, 8, 16, 16
    in_channels = 2 * C_each

    depth_feat = jax.random.normal(k_depth, (N, C_each, H, W), jnp.float32)
    semantic_feat = jax.random.normal(k_sem, (N, C_each, H, W), jnp.float32)
    params = init_params(k_params, in_channels)

    # float32 path — matches the PyTorch eval-mode forward.
    out = attention_fusion_forward(depth_feat, semantic_feat, params)
    out = jax.block_until_ready(out)
    ref = reference_forward(depth_feat, semantic_feat, params)
    assert out.shape == (N, in_channels, H, W)
    assert jnp.allclose(out, ref, atol=1e-5, rtol=1e-5), "f32 Pallas kernel mismatch vs reference"

    # bf16 streamed I/O path — bf16 tiles + bf16 folded weights go straight into the
    # MXU (f32 accumulation); halves HBM traffic on this bandwidth-bound op.
    depth_bf16 = depth_feat.astype(jnp.bfloat16)
    sem_bf16 = semantic_feat.astype(jnp.bfloat16)
    out_bf16 = attention_fusion_forward(depth_bf16, sem_bf16, params)
    out_bf16 = jax.block_until_ready(out_bf16)
    ref_bf16 = reference_forward(depth_bf16.astype(jnp.float32),
                                 sem_bf16.astype(jnp.float32), params)
    assert out_bf16.dtype == jnp.bfloat16
    assert jnp.allclose(out_bf16.astype(jnp.float32), ref_bf16, atol=5e-2, rtol=5e-2), \
        "bf16 Pallas kernel mismatch vs reference"

    # Non-128-multiple spatial size (e.g. 56x56): exercises the pad-to-128 path.
    H2, W2 = 12, 12
    d2 = jax.random.normal(k_depth, (1, C_each, H2, W2), jnp.float32)
    s2 = jax.random.normal(k_sem, (1, C_each, H2, W2), jnp.float32)
    out2 = jax.block_until_ready(attention_fusion_forward(d2, s2, params))
    ref2 = reference_forward(d2, s2, params)
    assert jnp.allclose(out2, ref2, atol=1e-5, rtol=1e-5), "padded-HW Pallas kernel mismatch"

    print("KERNEL_OK")
</pallas_src>

<mosaic_0001>
module attributes {stable_mosaic.version = 11 : i64} {
  func.func @_attention_fusion_kernel(%arg0: i32, %arg1: i32, %arg2: memref<1x8x256xf32, #tpu.memory_space<vmem>>, %arg3: memref<1x8x256xf32, #tpu.memory_space<vmem>>, %arg4: memref<4x8xf32, #tpu.memory_space<vmem>>, %arg5: memref<4x8xf32, #tpu.memory_space<vmem>>, %arg6: memref<4x1xf32, #tpu.memory_space<vmem>>, %arg7: memref<16x4xf32, #tpu.memory_space<vmem>>, %arg8: memref<16x1xf32, #tpu.memory_space<vmem>>, %arg9: memref<1x16x256xf32, #tpu.memory_space<vmem>>) attributes {dimension_semantics = [#tpu.dimension_semantics<parallel>, #tpu.dimension_semantics<parallel>], iteration_bounds = array<i64: 2, 1>, scalar_prefetch = 0 : i64, scratch_operands = 0 : i64, tpu.core_type = #tpu.core_type<tc>, window_params = [{transform_indices = @transform_0, window_bounds = array<i64: 1, 8, 256>}, {transform_indices = @transform_1, window_bounds = array<i64: 1, 8, 256>}, {pipeline_mode = #tpu.pipeline_mode<synchronous>, transform_indices = @transform_2, window_bounds = array<i64: 4, 8>}, {pipeline_mode = #tpu.pipeline_mode<synchronous>, transform_indices = @transform_3, window_bounds = array<i64: 4, 8>}, {pipeline_mode = #tpu.pipeline_mode<synchronous>, transform_indices = @transform_4, window_bounds = array<i64: 4, 1>}, {pipeline_mode = #tpu.pipeline_mode<synchronous>, transform_indices = @transform_5, window_bounds = array<i64: 16, 4>}, {pipeline_mode = #tpu.pipeline_mode<synchronous>, transform_indices = @transform_6, window_bounds = array<i64: 16, 1>}, {transform_indices = @transform_7, window_bounds = array<i64: 1, 16, 256>}]} {
    %c0 = arith.constant 0 : index
    %c0_0 = arith.constant 0 : index
    %c0_1 = arith.constant 0 : index
    %0 = vector.load %arg2[%c0, %c0_0, %c0_1] : memref<1x8x256xf32, #tpu.memory_space<vmem>>, vector<1x8x256xf32>
    %1 = vector.shape_cast %0 : vector<1x8x256xf32> to vector<8x256xf32>
    %c0_2 = arith.constant 0 : index
    %c0_3 = arith.constant 0 : index
    %c0_4 = arith.constant 0 : index
    %2 = vector.load %arg3[%c0_2, %c0_3, %c0_4] : memref<1x8x256xf32, #tpu.memory_space<vmem>>, vector<1x8x256xf32>
    %3 = vector.shape_cast %2 : vector<1x8x256xf32> to vector<8x256xf32>
    %c0_5 = arith.constant 0 : index
    %c0_6 = arith.constant 0 : index
    %4 = vector.load %arg4[%c0_5, %c0_6] : memref<4x8xf32, #tpu.memory_space<vmem>>, vector<4x8xf32>
    %cst = arith.constant dense<0.000000e+00> : vector<4x256xf32>
    %5 = tpu.matmul %4, %1, %cst {dimension_numbers = #tpu.dot_dimension_numbers<[1], [0], [0], [1], [0, 0, 1, 1], [], []>} : vector<4x8xf32>, vector<8x256xf32>, vector<4x256xf32> -> vector<4x256xf32>
    %c0_7 = arith.constant 0 : index
    %c0_8 = arith.constant 0 : index
    %6 = vector.load %arg5[%c0_7, %c0_8] : memref<4x8xf32, #tpu.memory_space<vmem>>, vector<4x8xf32>
    %cst_9 = arith.constant dense<0.000000e+00> : vector<4x256xf32>
    %7 = tpu.matmul %6, %3, %cst_9 {dimension_numbers = #tpu.dot_dimension_numbers<[1], [0], [0], [1], [0, 0, 1, 1], [], []>} : vector<4x8xf32>, vector<8x256xf32>, vector<4x256xf32> -> vector<4x256xf32>
    %8 = arith.addf %5, %7 : vector<4x256xf32>
    %c0_10 = arith.constant 0 : index
    %c0_11 = arith.constant 0 : index
    %9 = vector.load %arg6[%c0_10, %c0_11] : memref<4x1xf32, #tpu.memory_space<vmem>>, vector<4x1xf32>
    %10 = vector.broadcast %9 : vector<4x1xf32> to vector<4x256xf32>
    %11 = arith.addf %8, %10 : vector<4x256xf32>
    %cst_12 = arith.constant 0.00999999977 : f32
    %12 = vector.broadcast %cst_12 : f32 to vector<4x256xf32>
    %13 = arith.mulf %12, %11 : vector<4x256xf32>
    %14 = arith.maximumf %11, %13 : vector<4x256xf32>
    %c0_13 = arith.constant 0 : index
    %c0_14 = arith.constant 0 : index
    %15 = vector.load %arg7[%c0_13, %c0_14] : memref<16x4xf32, #tpu.memory_space<vmem>>, vector<16x4xf32>
    %cst_15 = arith.constant dense<0.000000e+00> : vector<16x256xf32>
    %16 = tpu.matmul %15, %14, %cst_15 {dimension_numbers = #tpu.dot_dimension_numbers<[1], [0], [0], [1], [0, 0, 1, 1], [], []>} : vector<16x4xf32>, vector<4x256xf32>, vector<16x256xf32> -> vector<16x256xf32>
    %c0_16 = arith.constant 0 : index
    %c0_17 = arith.constant 0 : index
    %17 = vector.load %arg8[%c0_16, %c0_17] : memref<16x1xf32, #tpu.memory_space<vmem>>, vector<16x1xf32>
    %18 = vector.broadcast %17 : vector<16x1xf32> to vector<16x256xf32>
    %19 = arith.addf %16, %18 : vector<16x256xf32>
    %cst_18 = arith.constant 0.000000e+00 : f32
    %20 = vector.broadcast %cst_18 : f32 to vector<16x256xf32>
    %21 = arith.subf %20, %19 : vector<16x256xf32>
    %22 = math.exp %21 : vector<16x256xf32>
    %cst_19 = arith.constant 1.000000e+00 : f32
    %23 = vector.broadcast %cst_19 : f32 to vector<16x256xf32>
    %24 = arith.addf %23, %22 : vector<16x256xf32>
    %25 = tpu.reciprocal %24 : vector<16x256xf32> -> vector<16x256xf32>
    %26 = vector.extract_strided_slice %25 {offsets = [0, 0], sizes = [8, 256], strides = [1, 1]} : vector<16x256xf32> to vector<8x256xf32>
    %27 = vector.extract_strided_slice %25 {offsets = [8, 0], sizes = [8, 256], strides = [1, 1]} : vector<16x256xf32> to vector<8x256xf32>
    %28 = arith.mulf %1, %26 : vector<8x256xf32>
    %29 = arith.mulf %3, %27 : vector<8x256xf32>
    %c0_20 = arith.constant 0 : index
    %c0_21 = arith.constant 0 : index
    %c0_22 = arith.constant 0 : index
    %30 = vector.load %arg9[%c0_20, %c0_21, %c0_22] : memref<1x16x256xf32, #tpu.memory_space<vmem>>, vector<1x8x256xf32>
    %31 = vector.shape_cast %30 : vector<1x8x256xf32> to vector<8x256xf32>
    %32 = vector.shape_cast %28 : vector<8x256xf32> to vector<1x8x256xf32>
    tpu.vector_store %arg9[%c0_20, %c0_21, %c0_22], %32 {strides = array<i32>} : memref<1x16x256xf32, #tpu.memory_space<vmem>>, vector<1x8x256xf32>,
    %c0_23 = arith.constant 0 : index
    %c8 = arith.constant 8 : index
    %c0_24 = arith.constant 0 : index
    %33 = vector.load %arg9[%c0_23, %c8, %c0_24] : memref<1x16x256xf32, #tpu.memory_space<vmem>>, vector<1x8x256xf32>
    %34 = vector.shape_cast %33 : vector<1x8x256xf32> to vector<8x256xf32>
    %35 = vector.shape_cast %29 : vector<8x256xf32> to vector<1x8x256xf32>
    tpu.vector_store %arg9[%c0_23, %c8, %c0_24], %35 {strides = array<i32>} : memref<1x16x256xf32, #tpu.memory_space<vmem>>, vector<1x8x256xf32>,
    return
  }
  func.func @transform_0(%arg0: i32, %arg1: i32) -> (i32, i32, i32) {
    %c0_i32 = arith.constant 0 : i32
    %c0_i32_0 = arith.constant 0 : i32
    return %arg0, %c0_i32, %arg1 : i32, i32, i32
  }
  func.func @transform_1(%arg0: i32, %arg1: i32) -> (i32, i32, i32) {
    %c0_i32 = arith.constant 0 : i32
    %c0_i32_0 = arith.constant 0 : i32
    return %arg0, %c0_i32, %arg1 : i32, i32, i32
  }
  func.func @transform_2(%arg0: i32, %arg1: i32) -> (i32, i32) {
    %c0_i32 = arith.constant 0 : i32
    %c0_i32_0 = arith.constant 0 : i32
    %c0_i32_1 = arith.constant 0 : i32
    return %c0_i32, %c0_i32_0 : i32, i32
  }
  func.func @transform_3(%arg0: i32, %arg1: i32) -> (i32, i32) {
    %c0_i32 = arith.constant 0 : i32
    %c0_i32_0 = arith.constant 0 : i32
    %c0_i32_1 = arith.constant 0 : i32
    return %c0_i32, %c0_i32_0 : i32, i32
  }
  func.func @transform_4(%arg0: i32, %arg1: i32) -> (i32, i32) {
    %c0_i32 = arith.constant 0 : i32
    %c0_i32_0 = arith.constant 0 : i32
    %c0_i32_1 = arith.constant 0 : i32
    return %c0_i32, %c0_i32_0 : i32, i32
  }
  func.func @transform_5(%arg0: i32, %arg1: i32) -> (i32, i32) {
    %c0_i32 = arith.constant 0 : i32
    %c0_i32_0 = arith.constant 0 : i32
    %c0_i32_1 = arith.constant 0 : i32
    return %c0_i32, %c0_i32_0 : i32, i32
  }
  func.func @transform_6(%arg0: i32, %arg1: i32) -> (i32, i32) {
    %c0_i32 = arith.constant 0 : i32
    %c0_i32_0 = arith.constant 0 : i32
    %c0_i32_1 = arith.constant 0 : i32
    return %c0_i32, %c0_i32_0 : i32, i32
  }
  func.func @transform_7(%arg0: i32, %arg1: i32) -> (i32, i32, i32) {
    %c0_i32 = arith.constant 0 : i32
    %c0_i32_0 = arith.constant 0 : i32
    return %arg0, %c0_i32, %arg1 : i32, i32, i32
  }
}

</mosaic_0001>

<llo_original>
// kernel: tpu_custom_call.1
$region0: #{tpu_custom_call.1}
  #allocation0 [shape = 'u32[]', space=smem, size = 0x4, offset = 0x4, fixed_abs, tag = 'smem constant byte address 0x4 - core index']
  #allocation1 [shape = 'u32[72,128]{1,0:T(1,128)}', space=vmem, size = 0x9000, scoped, tag = 'internal scratch']
  %s0 = inlined_call_operand.vmem [shape: f32[2,8,256], index: 0, kind: input, shape index: {}]
  %s1 = inlined_call_operand.hbm [shape: f32[2,8,256], index: 1, kind: input, shape index: {}]
  %s2 = inlined_call_operand.vmem [shape: f32[4,8], index: 2, kind: input, shape index: {}]
  %s3 = inlined_call_operand.hbm [shape: f32[4,8], index: 3, kind: input, shape index: {}]
  %s4 = inlined_call_operand.vmem [shape: f32[4,1], index: 4, kind: input, shape index: {}]
  %s5 = inlined_call_operand.vmem [shape: f32[16,4], index: 5, kind: input, shape index: {}]
  %s6 = inlined_call_operand.vmem [shape: f32[16,1], index: 6, kind: input, shape index: {}]
  %s7 = inlined_call_operand.hbm [shape: f32[2,16,256], index: 7, kind: output, shape index: {}]
  %s8 = sld [smem:[#allocation0]]
  $region69: #{tpu_custom_call.1} parent=0
    _
  %s10 = ssub.s32 1, %s8
  %s11 = scalar_select 0, %s10, %s8
  $region1: #{tpu_custom_call.1} parent=0
    #allocation2 [shape = 'u8[16384]{0}', space=vmem, size = 0x4000, scoped, tag = 'input window, operand 1']
    #allocation3 [shape = 's32[2]{0}', space=sflag, size = 0x8, scoped, tag = 'scoped memory for tpu_custom_call.1']
    #allocation4 [shape = 's32[2]{0}', space=sflag, size = 0x8, scoped, tag = 'scoped memory for tpu_custom_call.1']
    #allocation5 [shape = 'u8[2048]{0}', space=vmem, size = 0x800, scoped, tag = 'input window, operand 3, single buffered']
    #allocation6 [shape = 's32[1]{0}', space=sflag, size = 0x4, scoped, tag = 'scoped memory for tpu_custom_call.1']
    #allocation7 [shape = 'u8[32768]{0}', space=vmem, size = 0x8000, scoped, tag = 'output window, operand 0']
    %12 = vsyncpa [#allocation3], 0
    %s13 = scalar_lea.sflag [#allocation3], 1
    %14 = vsyncpa %s13, 0
    %15 = vsyncpa [#allocation6], 0
    %16 = vsyncpa [#allocation4], 0
    %s17 = scalar_lea.sflag [#allocation4], 1
    %18 = vsyncpa %s17, 0
    loop: start=0, step=1, limit=4
    $region2: #{tpu_custom_call.1} parent=1 // loop_pre_header
      _
    $region3: #{tpu_custom_call.1} parent=1 // loop_header
      %s20 = sphi 0, %s24
      %p21 = scmp.ge.s32.totalorder %s20, 4
      %s27 = sphi 0, %s39
      %s28 = sphi 0, %s35
      %s29 = sphi 0, %s27
      %s30 = sphi 0, %s28
      %s31 = sphi 0, %s29
      %s32 = sphi 0, %s30
      %s44 = sphi 0, %s46
      %s47 = sphi 0, %s44
      %s48 = sphi 0, %s47
      %s64 = sphi 0, %s48
      %s72 = sphi 0, %s74
      %s75 = sphi 0, %s72
      %s76 = sphi 0, %s75
      %s92 = sphi 0, %s76
      %s96 = sphi 0, %s96
      %s98 = sphi 0, %s96
      %s99 = sphi 0, %s98
      %s113 = sphi 0, %s99
      %s117 = sphi 0, %s117
      %s119 = sphi 0, %s117
      %s120 = sphi 0, %s119
      %s134 = sphi 0, %s120
      %s138 = sphi 0, %s138
      %s140 = sphi 0, %s138
      %s141 = sphi 0, %s140
      %s155 = sphi 0, %s141
      %s159 = sphi 0, %s159
      %s161 = sphi 0, %s159
      %s162 = sphi 0, %s161
      %s176 = sphi 0, %s162
      %s180 = sphi 0, %s180
      %s182 = sphi 0, %s180
      %s183 = sphi 0, %s182
      %s197 = sphi 0, %s183
      %s205 = sphi 0, %s207
      %s208 = sphi 0, %s205
      %s209 = sphi 0, %s208
      %s225 = sphi 0, %s209
    $region4: #{tpu_custom_call.1} parent=1 // loop_header_branch
      %23 = sbr.rel (%p21) target = $region8
    $region5: #{tpu_custom_call.1} parent=1 // loop_body
      %s25 = ssub.s32 %s20, 1
      %s26 = ssub.s32 %s20, 2
      %s33 = sadd.s32 1, %s28
      %p34 = scmp.ge.s32.totalorder %s33, 1
      %s35 = scalar_select %p34, 0, %s33
      %s36 = sadd.s32 1, %s27
      %s37 = scalar_select %p34, %s36, %s27
      %p38 = scmp.ge.s32.totalorder %s37, 2
      %s39 = scalar_select %p38, 0, %s37
      %s40 = ssub.s32 %s27, %s39
      %s41 = ssub.s32 %s28, %s35
      %s42 = sor.u32 %s40, %s41
      %p43 = scmp.eq.s32.totalorder %s42, 0
      %s45 = sadd.s32 %s44, 1
      %s46 = scalar_select %p43, %s44, %s45
      %p49 = pneg %p43
      %p50 = scmp.eq.s32.totalorder %s20, 1
      %p51 = por %p49, %p50
      %p52 = scmp.ne.s32.totalorder %s44, %s47
      %p53 = scmp.eq.s32.totalorder %s20, 0
      %p54 = por %p52, %p53
      %p55 = scmp.ne.s32.totalorder %s44, %s47
      %p56 = scmp.eq.s32.totalorder %s25, 1
      %p57 = por %p55, %p56
      %p58 = scmp.ne.s32.totalorder %s47, %s48
      %p59 = scmp.eq.s32.totalorder %s25, 0
      %p60 = por %p58, %p59
      %p61 = scmp.ne.s32.totalorder %s47, %s48
      %p62 = scmp.eq.s32.totalorder %s26, 1
      %p63 = por %p61, %p62
      %p65 = scmp.ne.s32.totalorder %s48, %s64
      %p66 = scmp.eq.s32.totalorder %s26, 0
      %p67 = por %p65, %p66
      %s68 = ssub.s32 %s27, %s39
      %s69 = ssub.s32 %s28, %s35
      %s70 = sor.u32 %s68, %s69
      %p71 = scmp.eq.s32.totalorder %s70, 0
      %s73 = sadd.s32 %s72, 1
      %s74 = scalar_select %p71, %s72, %s73
      %p77 = pneg %p71
      %p78 = scmp.eq.s32.totalorder %s20, 1
      %p79 = por %p77, %p78
      %p80 = scmp.ne.s32.totalorder %s72, %s75
      %p81 = scmp.eq.s32.totalorder %s20, 0
      %p82 = por %p80, %p81
      %p83 = scmp.ne.s32.totalorder %s72, %s75
      %p84 = scmp.eq.s32.totalorder %s25, 1
      %p85 = por %p83, %p84
      %p86 = scmp.ne.s32.totalorder %s75, %s76
      %p87 = scmp.eq.s32.totalorder %s25, 0
      %p88 = por %p86, %p87
      %p89 = scmp.ne.s32.totalorder %s75, %s76
      %p90 = scmp.eq.s32.totalorder %s26, 1
      %p91 = por %p89, %p90
      %p93 = scmp.ne.s32.totalorder %s76, %s92
      %p94 = scmp.eq.s32.totalorder %s26, 0
      %p95 = por %p93, %p94
      %s97 = sadd.s32 %s96, 1
      %p100 = scmp.eq.s32.totalorder %s20, 1
      %p101 = scmp.ne.s32.totalorder %s96, %s98
      %p102 = scmp.eq.s32.totalorder %s20, 0
      %p103 = por %p101, %p102
      %p104 = scmp.ne.s32.totalorder %s96, %s98
      %p105 = scmp.eq.s32.totalorder %s25, 1
      %p106 = por %p104, %p105
      %p107 = scmp.ne.s32.totalorder %s98, %s99
      %p108 = scmp.eq.s32.totalorder %s25, 0
      %p109 = por %p107, %p108
      %p110 = scmp.ne.s32.totalorder %s98, %s99
      %p111 = scmp.eq.s32.totalorder %s26, 1
      %p112 = por %p110, %p111
      %p114 = scmp.ne.s32.totalorder %s99, %s113
      %p115 = scmp.eq.s32.totalorder %s26, 0
      %p116 = por %p114, %p115
      %s118 = sadd.s32 %s117, 1
      %p121 = scmp.eq.s32.totalorder %s20, 1
      %p122 = scmp.ne.s32.totalorder %s117, %s119
      %p123 = scmp.eq.s32.totalorder %s20, 0
      %p124 = por %p122, %p123
      %p125 = scmp.ne.s32.totalorder %s117, %s119
      %p126 = scmp.eq.s32.totalorder %s25, 1
      %p127 = por %p125, %p126
      %p128 = scmp.ne.s32.totalorder %s119, %s120
      %p129 = scmp.eq.s32.totalorder %s25, 0
      %p130 = por %p128, %p129
      %p131 = scmp.ne.s32.totalorder %s119, %s120
      %p132 = scmp.eq.s32.totalorder %s26, 1
      %p133 = por %p131, %p132
      %p135 = scmp.ne.s32.totalorder %s120, %s134
      %p136 = scmp.eq.s32.totalorder %s26, 0
      %p137 = por %p135, %p136
      %s139 = sadd.s32 %s138, 1
      %p142 = scmp.eq.s32.totalorder %s20, 1
      %p143 = scmp.ne.s32.totalorder %s138, %s140
      %p144 = scmp.eq.s32.totalorder %s20, 0
      %p145 = por %p143, %p144
      %p146 = scmp.ne.s32.totalorder %s138, %s140
      %p147 = scmp.eq.s32.totalorder %s25, 1
      %p148 = por %p146, %p147
      %p149 = scmp.ne.s32.totalorder %s140, %s141
      %p150 = scmp.eq.s32.totalorder %s25, 0
      %p151 = por %p149, %p150
      %p152 = scmp.ne.s32.totalorder %s140, %s141
      %p153 = scmp.eq.s32.totalorder %s26, 1
      %p154 = por %p152, %p153
      %p156 = scmp.ne.s32.totalorder %s141, %s155
      %p157 = scmp.eq.s32.totalorder %s26, 0
      %p158 = por %p156, %p157
      %s160 = sadd.s32 %s159, 1
      %p163 = scmp.eq.s32.totalorder %s20, 1
      %p164 = scmp.ne.s32.totalorder %s159, %s161
      %p165 = scmp.eq.s32.totalorder %s20, 0
      %p166 = por %p164, %p165
      %p167 = scmp.ne.s32.totalorder %s159, %s161
      %p168 = scmp.eq.s32.totalorder %s25, 1
      %p169 = por %p167, %p168
      %p170 = scmp.ne.s32.totalorder %s161, %s162
      %p171 = scmp.eq.s32.totalorder %s25, 0
      %p172 = por %p170, %p171
      %p173 = scmp.ne.s32.totalorder %s161, %s162
      %p174 = scmp.eq.s32.totalorder %s26, 1
      %p175 = por %p173, %p174
      %p177 = scmp.ne.s32.totalorder %s162, %s176
      %p178 = scmp.eq.s32.totalorder %s26, 0
      %p179 = por %p177, %p178
      %s181 = sadd.s32 %s180, 1
      %p184 = scmp.eq.s32.totalorder %s20, 1
      %p185 = scmp.ne.s32.totalorder %s180, %s182
      %p186 = scmp.eq.s32.totalorder %s20, 0
      %p187 = por %p185, %p186
      %p188 = scmp.ne.s32.totalorder %s180, %s182
      %p189 = scmp.eq.s32.totalorder %s25, 1
      %p190 = por %p188, %p189
      %p191 = scmp.ne.s32.totalorder %s182, %s183
      %p192 = scmp.eq.s32.totalorder %s25, 0
      %p193 = por %p191, %p192
      %p194 = scmp.ne.s32.totalorder %s182, %s183
      %p195 = scmp.eq.s32.totalorder %s26, 1
      %p196 = por %p194, %p195
      %p198 = scmp.ne.s32.totalorder %s183, %s197
      %p199 = scmp.eq.s32.totalorder %s26, 0
      %p200 = por %p198, %p199
      %s201 = ssub.s32 %s27, %s39
      %s202 = ssub.s32 %s28, %s35
      %s203 = sor.u32 %s201, %s202
      %p204 = scmp.eq.s32.totalorder %s203, 0
      %s206 = sadd.s32 %s205, 1
      %s207 = scalar_select %p204, %s205, %s206
      %p210 = pneg %p204
      %p211 = scmp.eq.s32.totalorder %s20, 1
      %p212 = por %p210, %p211
      %p213 = scmp.ne.s32.totalorder %s205, %s208
      %p214 = scmp.eq.s32.totalorder %s20, 0
      %p215 = por %p213, %p214
      %p216 = scmp.ne.s32.totalorder %s205, %s208
      %p217 = scmp.eq.s32.totalorder %s25, 1
      %p218 = por %p216, %p217
      %p219 = scmp.ne.s32.totalorder %s208, %s209
      %p220 = scmp.eq.s32.totalorder %s25, 0
      %p221 = por %p219, %p220
      %p222 = scmp.ne.s32.totalorder %s208, %s209
      %p223 = scmp.eq.s32.totalorder %s26, 1
      %p224 = por %p222, %p223
      %p226 = scmp.ne.s32.totalorder %s209, %s225
      %p227 = scmp.eq.s32.totalorder %s26, 0
      %p228 = por %p226, %p227
      %p229 = scmp.le.s32.totalorder 1, %s20
      %p230 = scmp.lt.s32.totalorder %s20, 3
      %p231 = pnand %p229, %p230
      %p232 = pneg %p231
      // Predicated region
      $region9: #{tpu_custom_call.1} parent=5 // pred_check
        _
      $region10: #{tpu_custom_call.1} parent=5 // pred_check_branch
        %234 = sbr.rel (%p231) target = $region12
      $region11: #{tpu_custom_call.1} parent=5 // pred_region
        %s235 = ssub.s32 %s20, 1
        // Predicated region
        $region13: #{tpu_custom_call.1} parent=11 // pred_check
          %p236 = pneg %p109
        $region14: #{tpu_custom_call.1} parent=11 // pred_check_branch
          %238 = sbr.rel (%p236) target = $region16
        $region15: #{tpu_custom_call.1} parent=11 // pred_region
          _
        $region16: #{tpu_custom_call.1} parent=11 // pred_fallthru
          _
        // Predicated region
        $region17: #{tpu_custom_call.1} parent=11 // pred_check
          %p239 = pneg %p130
        $region18: #{tpu_custom_call.1} parent=11 // pred_check_branch
          %241 = sbr.rel (%p239) target = $region20
        $region19: #{tpu_custom_call.1} parent=11 // pred_region
          %243 = vsyncadd [#allocation6], 0
          %s245 = sshll.u32 %s3, 4
          %s246 = int_to_ptr.hbm [resolvable:$true] %s245
          %s247 = sshll.u32 [#allocation5], 4
          %s248 = int_to_ptr.vmem [resolvable:$true] %s247
          %250 = dma.hbm_to_vmem [thread:$0]  %s246, 64, %s248, [#allocation6]
        $region20: #{tpu_custom_call.1} parent=11 // pred_fallthru
          _
        // Predicated region
        $region21: #{tpu_custom_call.1} parent=11 // pred_check
          %p251 = pneg %p151
        $region22: #{tpu_custom_call.1} parent=11 // pred_check_branch
          %253 = sbr.rel (%p251) target = $region24
        $region23: #{tpu_custom_call.1} parent=11 // pred_region
          _
        $region24: #{tpu_custom_call.1} parent=11 // pred_fallthru
          _
        // Predicated region
        $region25: #{tpu_custom_call.1} parent=11 // pred_check
          %p254 = pneg %p172
        $region26: #{tpu_custom_call.1} parent=11 // pred_check_branch
          %256 = sbr.rel (%p254) target = $region28
        $region27: #{tpu_custom_call.1} parent=11 // pred_region
          _
        $region28: #{tpu_custom_call.1} parent=11 // pred_fallthru
          _
        // Predicated region
        $region29: #{tpu_custom_call.1} parent=11 // pred_check
          %p257 = pneg %p193
        $region30: #{tpu_custom_call.1} parent=11 // pred_check_branch
          %259 = sbr.rel (%p257) target = $region32
        $region31: #{tpu_custom_call.1} parent=11 // pred_region
          _
        $region32: #{tpu_custom_call.1} parent=11 // pred_fallthru
          _
      $region12: #{tpu_custom_call.1} parent=5 // pred_fallthru
        _
      %p260 = scmp.lt.s32.totalorder %s20, 2
      // Predicated region
      $region33: #{tpu_custom_call.1} parent=5 // pred_check
        %p261 = pneg %p260
      $region34: #{tpu_custom_call.1} parent=5 // pred_check_branch
        %263 = sbr.rel (%p261) target = $region36
      $region35: #{tpu_custom_call.1} parent=5 // pred_region
        // Predicated region
        $region37: #{tpu_custom_call.1} parent=35 // pred_check
          %p264 = pneg %p54
        $region38: #{tpu_custom_call.1} parent=35 // pred_check_branch
          %266 = sbr.rel (%p264) target = $region40
        $region39: #{tpu_custom_call.1} parent=35 // pred_region
          %s267 = smul.u32 2, %s28
          %p268 = scmp.lt.s32.totalorder %s27, 1
          %s269 = scalar_select %p268, %s27, 1
          %p270 = scmp.lt.s32.totalorder %s267, 1
          %s271 = scalar_select %p270, %s267, 1
          %s272 = smul.addr %s269, 2
          %s273 = sadd.s32 %s271, %s272
          %s274 = smul.addr %s273, 8
          %s275 = scalar_lea.vmem %s0, %s274
          %s276 = smul.u32 2, %s28
        $region40: #{tpu_custom_call.1} parent=35 // pred_fallthru
          _
        // Predicated region
        $region41: #{tpu_custom_call.1} parent=35 // pred_check
          %p277 = pneg %p82
        $region42: #{tpu_custom_call.1} parent=35 // pred_check_branch
          %279 = sbr.rel (%p277) target = $region44
        $region43: #{tpu_custom_call.1} parent=35 // pred_region
          %s280 = sand.u32 %s72, 1
          %s281 = scalar_lea.sflag [#allocation3], %s280
          %s282 = sand.u32 %s72, 1
          %s283 = smul.addr %s282, 16
          %s284 = scalar_lea.vmem [#allocation2], %s283
          %s285 = smul.u32 2, %s28
          %287 = vsyncadd %s281, 0
          %s288 = smul.addr %s27, 2
          %s289 = sadd.s32 %s285, %s288
          %s290 = smul.addr %s289, 8
          %s291 = scalar_lea.hbm %s1, %s290
          %s293 = sshll.u32 %s291, 4
          %s294 = int_to_ptr.hbm [resolvable:$true] %s293
          %s295 = sshll.u32 %s284, 4
          %s296 = int_to_ptr.vmem [resolvable:$true] %s295
          %298 = dma.hbm_to_vmem [thread:$0]  %s294, 256, %s296, %s281
        $region44: #{tpu_custom_call.1} parent=35 // pred_fallthru
          _
      $region36: #{tpu_custom_call.1} parent=5 // pred_fallthru
        _
      %p299 = scmp.le.s32.totalorder 1, %s20
      %p300 = scmp.lt.s32.totalorder %s20, 3
      %p301 = pnand %p299, %p300
      %p302 = pneg %p301
      // Predicated region
      $region45: #{tpu_custom_call.1} parent=5 // pred_check
        _
      $region46: #{tpu_custom_call.1} parent=5 // pred_check_branch
        %304 = sbr.rel (%p301) target = $region48
      $region47: #{tpu_custom_call.1} parent=5 // pred_region
        %s305 = ssub.s32 %s20, 1
        %s306 = sand.u32 %s75, 1
        %s307 = scalar_lea.sflag [#allocation3], %s306
        %s308 = sand.u32 %s75, 1
        %s309 = smul.addr %s308, 16
        %s310 = scalar_lea.vmem [#allocation2], %s309
        // Predicated region
        $region49: #{tpu_custom_call.1} parent=47 // pred_check
          %p311 = pneg %p88
        $region50: #{tpu_custom_call.1} parent=47 // pred_check_branch
          %313 = sbr.rel (%p311) target = $region52
        $region51: #{tpu_custom_call.1} parent=47 // pred_region
          %315 = dma.done %s307, 256
        $region52: #{tpu_custom_call.1} parent=47 // pred_fallthru
          _
        // Predicated region
        $region53: #{tpu_custom_call.1} parent=47 // pred_check
          %p316 = pneg %p130
        $region54: #{tpu_custom_call.1} parent=47 // pred_check_branch
          %318 = sbr.rel (%p316) target = $region56
        $region55: #{tpu_custom_call.1} parent=47 // pred_region
          %320 = dma.done [#allocation6], 64
        $region56: #{tpu_custom_call.1} parent=47 // pred_fallthru
          _
        %s321 = smul.u32 2, %s30
        %p322 = scmp.lt.s32.totalorder %s29, 1
        %s323 = scalar_select %p322, %s29, 1
        %p324 = scmp.lt.s32.totalorder %s321, 1
        %s325 = scalar_select %p324, %s321, 1
        %s326 = smul.addr %s323, 2
        %s327 = sadd.s32 %s325, %s326
        %s328 = smul.addr %s327, 8
        %s329 = scalar_lea.vmem %s0, %s328
        %p330 = pneg %p60
        %p331 = pneg %p57
        %s332 = sand.u32 %s75, 1
        %s333 = scalar_lea.sflag [#allocation3], %s332
        %s334 = sand.u32 %s75, 1
        %s335 = smul.addr %s334, 16
        %s336 = scalar_lea.vmem [#allocation2], %s335
        %p337 = pneg %p88
        %p338 = pneg %p85
        %p339 = pneg %p109
        %p340 = pneg %p106
        %p341 = pneg %p130
        %p342 = pneg %p127
        %p343 = pneg %p151
        %p344 = pneg %p148
        %p345 = pneg %p172
        %p346 = pneg %p169
        %p347 = pneg %p193
        %p348 = pneg %p190
        %p349 = pneg %p221
        %p350 = pneg %p218
        %s351 = sand.u32 %s208, 1
        %s352 = scalar_lea.sflag [#allocation4], %s351
        %s353 = sand.u32 %s208, 1
        %s354 = smul.addr %s353, 32
        %s355 = scalar_lea.vmem [#allocation7], %s354
        %s356 = smul.u32 2, %s30
        %p357 = scmp.lt.s32.totalorder %s29, 1
        %s358 = scalar_select %p357, %s29, 1
        %p359 = scmp.lt.s32.totalorder %s356, 1
        %s360 = scalar_select %p359, %s356, 1
        %s361 = smul.addr %s358, 2
        %s362 = sadd.s32 %s360, %s361
        %s363 = smul.addr %s362, 8
        %s364 = scalar_lea.vmem %s0, %s363
        %s365 = smul.u32 2, %s30
        %s366 = smul.u32 2, %s30
        %s367 = smul.u32 2, %s30
        %v368 = vld [vmem:[%s364] sm:$0xff]
        %v369 = vld [vmem:[%s364 + $0x8] sm:$0xff]
        %v370 = vld [vmem:[%s310] sm:$0xff]
        %v371 = vld [vmem:[%s310 + $0x8] sm:$0xff]
        %v372 = vld [vmem:[%s2] sm:$0xf]
        %v373 = vld [vmem:[#allocation5] sm:$0xf]
        %vm374 = vcmask 64512
        %v376 = vsel %vm374, %v373, 0
        %378 = vmatpush.msra.mxu0 0.0
        %379 = vmatpush.msra.mxu0 0.0
        %380 = vmatpush.msra.mxu0 0.0
        %381 = vmatpush.msra.mxu0 0.0
        %382 = vmatpush.msra.mxu0 0.0
        %383 = vmatpush.msra.mxu0 0.0
        %384 = vmatpush.msra.mxu0 0.0
        %385 = vmatpush.msra.mxu0 0.0
        %386 = vmatpush.msra.mxu0 0.0
        %387 = vmatpush.msra.mxu0 0.0
        %388 = vmatpush.msra.mxu0 0.0
        %389 = vmatpush.msra.mxu0 0.0
        %390 = vmatpush.msra.mxu0 0.0
        %391 = vmatpush.msra.mxu0 0.0
        %392 = vmatpush.msra.mxu0 0.0
        %393 = vmatpush.msra.mxu0 %v370
        %394 = vmatmul.f32.gmra.mxu0 %v376
        %v395 = vpop.f32.mrf.mxu0
        %v396 = vadd.f32 0.0, %v395
        %397 = vdwg.mxu0
        %398 = vmatpush.msra.mxu0 0.0
        %399 = vmatpush.msra.mxu0 0.0
        %400 = vmatpush.msra.mxu0 0.0
        %401 = vmatpush.msra.mxu0 0.0
        %402 = vmatpush.msra.mxu0 0.0
        %403 = vmatpush.msra.mxu0 0.0
        %404 = vmatpush.msra.mxu0 0.0
        %405 = vmatpush.msra.mxu0 0.0
        %406 = vmatpush.msra.mxu0 0.0
        %407 = vmatpush.msra.mxu0 0.0
        %408 = vmatpush.msra.mxu0 0.0
        %409 = vmatpush.msra.mxu0 0.0
        %410 = vmatpush.msra.mxu0 0.0
        %411 = vmatpush.msra.mxu0 0.0
        %412 = vmatpush.msra.mxu0 0.0
        %413 = vmatpush.msra.mxu0 %v371
        %414 = vmatmul.f32.gmra.mxu0 %v376
        %v415 = vpop.f32.mrf.mxu0
        %v416 = vadd.f32 0.0, %v415
        %417 = vdwg.mxu0
        %v419 = vsel %vm374, %v372, 0
        %421 = vmatpush.msra.mxu0 0.0
        %422 = vmatpush.msra.mxu0 0.0
        %423 = vmatpush.msra.mxu0 0.0
        %424 = vmatpush.msra.mxu0 0.0
        %425 = vmatpush.msra.mxu0 0.0
        %426 = vmatpush.msra.mxu0 0.0
        %427 = vmatpush.msra.mxu0 0.0
        %428 = vmatpush.msra.mxu0 0.0
        %429 = vmatpush.msra.mxu0 0.0
        %430 = vmatpush.msra.mxu0 0.0
        %431 = vmatpush.msra.mxu0 0.0
        %432 = vmatpush.msra.mxu0 0.0
        %433 = vmatpush.msra.mxu0 0.0
        %434 = vmatpush.msra.mxu0 0.0
        %435 = vmatpush.msra.mxu0 0.0
        %436 = vmatpush.msra.mxu0 %v368
        %437 = vmatmul.f32.gmra.mxu0 %v419
        %v438 = vpop.f32.mrf.mxu0
        %v439 = vadd.f32 %v396, %v438
        %440 = vdwg.mxu0
        %441 = vmatpush.msra.mxu0 0.0
        %442 = vmatpush.msra.mxu0 0.0
        %443 = vmatpush.msra.mxu0 0.0
        %444 = vmatpush.msra.mxu0 0.0
        %445 = vmatpush.msra.mxu0 0.0
        %446 = vmatpush.msra.mxu0 0.0
        %447 = vmatpush.msra.mxu0 0.0
        %448 = vmatpush.msra.mxu0 0.0
        %449 = vmatpush.msra.mxu0 0.0
        %450 = vmatpush.msra.mxu0 0.0
        %451 = vmatpush.msra.mxu0 0.0
        %452 = vmatpush.msra.mxu0 0.0
        %453 = vmatpush.msra.mxu0 0.0
        %454 = vmatpush.msra.mxu0 0.0
        %455 = vmatpush.msra.mxu0 0.0
        %456 = vmatpush.msra.mxu0 %v369
        %457 = vmatmul.f32.gmra.mxu0 %v419
        %v458 = vpop.f32.mrf.mxu0
        %v459 = vadd.f32 %v416, %v458
        %460 = vdwg.mxu0
        %v461 = vld [vmem:[%s4] sm:$0xf]
        %463 = vset.pattern.permute.xlu0 0
        %464 = vperm.xlu0 %463, %v461
        %v465 = vpop.permute.xlu0 %464
        %v467 = vadd.f32 %v439, %v465
        %v468 = vadd.f32 %v459, %v465
        %v469 = vmul.f32 %v467, 0.01
        %v470 = vmul.f32 %v468, 0.01
        %v471 = vmax.f32 %v467, %v469
        %v472 = vmax.f32 %v468, %v470
        %v473 = vld [vmem:[%s5] sm:$0xff]
        %v474 = vld [vmem:[%s5 + $0x8] sm:$0xff]
        %v475 = vld [vmem:[%s6] sm:$0xff]
        %v476 = vld [vmem:[%s6 + $0x8] sm:$0xff]
        %478 = vset.pattern.permute.xlu0 0
        %479 = vperm.xlu0 %478, %v475
        %v480 = vpop.permute.xlu0 %479
        %483 = vset.pattern.permute.xlu0 0
        %484 = vperm.xlu0 %483, %v476
        %v485 = vpop.permute.xlu0 %484
        %vm487 = vcmask 31744
        %v489 = vsel %vm487, %v473, 0
        %v492 = vsel %vm487, %v474, 0
        %vm494 = vcmask 1043456
        %v496 = vsel %vm494, %v471, 0
        %v499 = vsel %vm494, %v472, 0
        %501 = vmatpush.msra.mxu0 0.0
        %502 = vmatpush.msra.mxu0 0.0
        %503 = vmatpush.msra.mxu0 0.0
        %504 = vmatpush.msra.mxu0 0.0
        %505 = vmatpush.msra.mxu0 0.0
        %506 = vmatpush.msra.mxu0 0.0
        %507 = vmatpush.msra.mxu0 0.0
        %508 = vmatpush.msra.mxu0 0.0
        %509 = vmatpush.msra.mxu0 0.0
        %510 = vmatpush.msra.mxu0 0.0
        %511 = vmatpush.msra.mxu0 0.0
        %512 = vmatpush.msra.mxu0 0.0
        %513 = vmatpush.msra.mxu0 0.0
        %514 = vmatpush.msra.mxu0 0.0
        %515 = vmatpush.msra.mxu0 0.0
        %516 = vmatpush.msra.mxu0 %v496
        %517 = vmatmul.f32.gmra.mxu0 %v489
        %v518 = vpop.f32.mrf.mxu0
        %v519 = vadd.f32 %v480, %v518
        %520 = vmatmul.f32.gmra.mxu0 %v492
        %v521 = vpop.f32.mrf.mxu0
        %v522 = vadd.f32 %v485, %v521
        %523 = vdwg.mxu0
        %524 = vmatpush.msra.mxu0 0.0
        %525 = vmatpush.msra.mxu0 0.0
        %526 = vmatpush.msra.mxu0 0.0
        %527 = vmatpush.msra.mxu0 0.0
        %528 = vmatpush.msra.mxu0 0.0
        %529 = vmatpush.msra.mxu0 0.0
        %530 = vmatpush.msra.mxu0 0.0
        %531 = vmatpush.msra.mxu0 0.0
        %532 = vmatpush.msra.mxu0 0.0
        %533 = vmatpush.msra.mxu0 0.0
        %534 = vmatpush.msra.mxu0 0.0
        %535 = vmatpush.msra.mxu0 0.0
        %536 = vmatpush.msra.mxu0 0.0
        %537 = vmatpush.msra.mxu0 0.0
        %538 = vmatpush.msra.mxu0 0.0
        %539 = vmatpush.msra.mxu0 %v499
        %540 = vmatmul.f32.gmra.mxu0 %v489
        %v541 = vpop.f32.mrf.mxu0
        %v542 = vadd.f32 %v480, %v541
        %543 = vmatmul.f32.gmra.mxu0 %v492
        %v544 = vpop.f32.mrf.mxu0
        %v545 = vadd.f32 %v485, %v544
        %546 = vdwg.mxu0
        %v547 = vsub.f32 0.0, %v519
        %v548 = vsub.f32 0.0, %v542
        %v549 = vsub.f32 0.0, %v522
        %v550 = vsub.f32 0.0, %v545
        %v551 = vmul.f32 %v547, 1.442695
        %v552 = vpow.pop %v551
        %v553 = vmul.f32 %v548, 1.442695
        %v554 = vpow.pop %v553
        %v555 = vmul.f32 %v549, 1.442695
        %v556 = vpow.pop %v555
        %v557 = vmul.f32 %v550, 1.442695
        %v558 = vpow.pop %v557
        %v559 = vadd.f32 %v552, 1.0
        %v560 = vadd.f32 %v554, 1.0
        %v561 = vadd.f32 %v556, 1.0
        %v562 = vadd.f32 %v558, 1.0
        %v563 = vrcp.pop %v559
        %v564 = vmul.f32 %v559, %v563
        %v565 = vsub.f32 1.0, %v564
        %v566 = vmul.f32 %v563, %v565
        %v567 = vadd.f32 %v563, %v566
        %vm568 = vweird.f32 %v559
        %vm569 = vweird.f32 %v563
        %vm570 = vmor %vm568, %vm569
        %v571 = vsel %vm570, %v563, %v567
        %v572 = vand.u32 2147483647, %v559
        %vm573 = vcmp.eq.f32.partialorder %v572, 8.507059e+37
        %v574 = vand.u32 %v559, 2147483648
        %v575 = vor.u32 1.1754944e-38, %v574
        %v576 = vsel %vm573, %v575, %v571
        %v577 = vrcp.pop %v560
        %v578 = vmul.f32 %v560, %v577
        %v579 = vsub.f32 1.0, %v578
        %v580 = vmul.f32 %v577, %v579
        %v581 = vadd.f32 %v577, %v580
        %vm582 = vweird.f32 %v560
        %vm583 = vweird.f32 %v577
        %vm584 = vmor %vm582, %vm583
        %v585 = vsel %vm584, %v577, %v581
        %v586 = vand.u32 2147483647, %v560
        %vm587 = vcmp.eq.f32.partialorder %v586, 8.507059e+37
        %v588 = vand.u32 %v560, 2147483648
        %v589 = vor.u32 1.1754944e-38, %v588
        %v590 = vsel %vm587, %v589, %v585
        %v591 = vrcp.pop %v561
        %v592 = vmul.f32 %v561, %v591
        %v593 = vsub.f32 1.0, %v592
        %v594 = vmul.f32 %v591, %v593
        %v595 = vadd.f32 %v591, %v594
        %vm596 = vweird.f32 %v561
        %vm597 = vweird.f32 %v591
        %vm598 = vmor %vm596, %vm597
        %v599 = vsel %vm598, %v591, %v595
        %v600 = vand.u32 2147483647, %v561
        %vm601 = vcmp.eq.f32.partialorder %v600, 8.507059e+37
        %v602 = vand.u32 %v561, 2147483648
        %v603 = vor.u32 1.1754944e-38, %v602
        %v604 = vsel %vm601, %v603, %v599
        %v605 = vrcp.pop %v562
        %v606 = vmul.f32 %v562, %v605
        %v607 = vsub.f32 1.0, %v606
        %v608 = vmul.f32 %v605, %v607
        %v609 = vadd.f32 %v605, %v608
        %vm610 = vweird.f32 %v562
        %vm611 = vweird.f32 %v605
        %vm612 = vmor %vm610, %vm611
        %v613 = vsel %vm612, %v605, %v609
        %v614 = vand.u32 2147483647, %v562
        %vm615 = vcmp.eq.f32.partialorder %v614, 8.507059e+37
        %v616 = vand.u32 %v562, 2147483648
        %v617 = vor.u32 1.1754944e-38, %v616
        %v618 = vsel %vm615, %v617, %v613
        %v619 = vmul.f32 %v368, %v576
        %v620 = vmul.f32 %v369, %v590
        %v621 = vmul.f32 %v370, %v604
        %v622 = vmul.f32 %v371, %v618
        %623 = vst [vmem:[%s355] sm:$0xff] %v619
        %624 = vst [vmem:[%s355 + $0x8] sm:$0xff] %v620
        %625 = vst [vmem:[%s355 + $0x10] sm:$0xff] %v621
        %626 = vst [vmem:[%s355 + $0x18] sm:$0xff] %v622
        %s627 = sand.u32 %s208, 1
        %s628 = scalar_lea.sflag [#allocation4], %s627
        %s629 = sand.u32 %s208, 1
        %s630 = smul.addr %s629, 32
        %s631 = scalar_lea.vmem [#allocation7], %s630
        // Predicated region
        $region57: #{tpu_custom_call.1} parent=47 // pred_check
          %p632 = pneg %p218
        $region58: #{tpu_custom_call.1} parent=47 // pred_check_branch
          %634 = sbr.rel (%p632) target = $region60
        $region59: #{tpu_custom_call.1} parent=47 // pred_region
          %s635 = smul.u32 2, %s30
          %637 = vsyncadd %s628, 0
          %s638 = smul.addr %s29, 4
          %s639 = sadd.s32 %s635, %s638
          %s640 = smul.addr %s639, 8
          %s641 = scalar_lea.hbm %s7, %s640
          %s642 = sshll.u32 %s631, 4
          %s643 = int_to_ptr.vmem [resolvable:$true] %s642
          %s644 = sshll.u32 %s641, 4
          %s645 = int_to_ptr.hbm [resolvable:$true] %s644
          %650 = dma.vmem_to_hbm [thread:$0]  %s643, 512, %s645, %s628, 256, 256, 16
        $region60: #{tpu_custom_call.1} parent=47 // pred_fallthru
          _
      $region48: #{tpu_custom_call.1} parent=5 // pred_fallthru
        _
      %p651 = scmp.le.s32.totalorder 2, %s20
      // Predicated region
      $region61: #{tpu_custom_call.1} parent=5 // pred_check
        %p652 = pneg %p651
      $region62: #{tpu_custom_call.1} parent=5 // pred_check_branch
        %654 = sbr.rel (%p652) target = $region64
      $region63: #{tpu_custom_call.1} parent=5 // pred_region
        %s655 = ssub.s32 %s20, 2
        // Predicated region
        $region65: #{tpu_custom_call.1} parent=63 // pred_check
          %p656 = pneg %p224
        $region66: #{tpu_custom_call.1} parent=63 // pred_check_branch
          %658 = sbr.rel (%p656) target = $region68
        $region67: #{tpu_custom_call.1} parent=63 // pred_region
          %s659 = sand.u32 %s209, 1
          %s660 = scalar_lea.sflag [#allocation4], %s659
          %s661 = sand.u32 %s209, 1
          %s662 = smul.addr %s661, 32
          %s663 = scalar_lea.vmem [#allocation7], %s662
          %665 = dma.done %s660, 512
        $region68: #{tpu_custom_call.1} parent=63 // pred_fallthru
          _
      $region64: #{tpu_custom_call.1} parent=5 // pred_fallthru
        _
    $region6: #{tpu_custom_call.1} parent=1 // loop_footer
      %s24 = sadd.s32 1, %s20
    $region7: #{tpu_custom_call.1} parent=1 // loop_footer_branch
      %19 = sbr.rel target = $region3
    $region8: #{tpu_custom_call.1} parent=1 // loop_exit
      _
    %666 = vsyncpa [#allocation3], 1
    %s667 = scalar_lea.sflag [#allocation3], 1
    %668 = vsyncpa %s667, 1
    %669 = vsyncpa [#allocation6], 1
    %670 = vsyncpa [#allocation4], 1
    %s671 = scalar_lea.sflag [#allocation4], 1
    %672 = vsyncpa %s671, 1

</llo_original>
